<compile_context>
chip_gen: v7x
topology: tpu7x:2x2x1
jax: 0.10.0
libtpu: 0.0.40
codegen_flags: <defaults>
</compile_context>

<pallas_src>
import jax
import jax.numpy as jnp
from jax.experimental import pallas as pl
from jax.experimental.pallas import tpu as pltpu


def _round_up(x: int, m: int) -> int:
    return ((x + m - 1) // m) * m


def _vmem_capacity_bytes() -> int:
    """Physical VMEM per TensorCore; conservative (v7x, 64 MiB) default."""
    try:
        return int(pltpu.get_tpu_info().vmem_capacity_bytes)
    except Exception:
        return 64 * 1024 * 1024


def _compiler_params(dim_sem, vmem_limit):
    return pltpu.CompilerParams(
        dimension_semantics=dim_sem,
        vmem_limit_bytes=int(vmem_limit),
    )


def load_images_pallas(image_list):
    """Mimics LoadImages.forward on already-decoded images.

    image_list: list of N uint8 arrays, each of shape (C, H, W).
    Returns: float32 array of shape (N, C, H, W)  (== torch.stack(...).to(float32)).
    """
    N = len(image_list)
    C, H, W = image_list[0].shape
    P = C * H * W

    vmem_cap = _vmem_capacity_bytes()
    # Per-generation output-block target: ~8 MiB on v7x (64 MiB VMEM/TC),
    # ~24 MiB on v5e/v6e (128 MiB VMEM).
    target_out_bytes = (8 << 20) if vmem_cap <= (80 << 20) else (24 << 20)
    # Keep the double-buffered (u8 inputs + f32 output) pipeline footprint
    # well under physical VMEM.
    fit_budget = int(0.60 * vmem_cap)
    vmem_cap75 = int(0.75 * vmem_cap)

    # ------------------------------------------------------------------ #
    # Fast path: C*H*W divisible by 128 -> lane-dense (R, K) view.
    # ------------------------------------------------------------------ #
    if P % 128 == 0:
        K = 128
        for cand in (8192, 4096, 2048, 1024, 512, 256, 128):
            if P % cand == 0:
                K = cand
                break
        R = P // K

        # Very large N: per-image blocks would not fit VMEM even at 32 rows;
        # fall back to one stacked input with N split into the grid.
        # TODO(synk): this fallback costs one extra uint8 HBM pass (the stack).
        stacked = (10 * N * 32 * K) > fit_budget
        n_blk = 1 if stacked else N

        # Row tile: aim for >=8 grid steps (v7x dual-TC sharding + pipeline)
        # while tiles stay >=256 rows, else >=2 steps, else one full block.
        if R >= 8 * 256:
            tm_par = _round_up(pl.cdiv(R, 8), 32)
        elif R >= 64:
            tm_par = _round_up(pl.cdiv(R, 2), 32)
        else:
            tm_par = R
        tm_target = max(32, (target_out_bytes // (n_blk * K * 4)) // 32 * 32)
        tm_fit = max(32, (fit_budget // (10 * n_blk * K)) // 32 * 32)
        tm = min(tm_target, tm_fit, tm_par)
        if tm >= R:
            tm = R                      # full-extent row block (always legal)
        num_tiles = pl.cdiv(R, tm)

        blk_vmem = n_blk * max(tm, 32) * K * 5      # u8 inputs + f32 output
        vmem_limit = min(vmem_cap75, max(2 * blk_vmem + (8 << 20), 32 << 20))

        if not stacked:
            def kernel(*refs):
                in_refs, o_ref = refs[:-1], refs[-1]
                # Fused "stack + cast": each image's uint8 tile goes into its
                # slot of the float32 output block (static loop; N is small).
                for n in range(N):
                    o_ref[n, :, :] = in_refs[n][...].astype(jnp.float32)

            out = pl.pallas_call(
                kernel,
                out_shape=jax.ShapeDtypeStruct((N, R, K), jnp.float32),
                grid=(num_tiles,),
                in_specs=[pl.BlockSpec((tm, K), lambda t: (t, 0))
                          for _ in range(N)],
                out_specs=pl.BlockSpec((N, tm, K), lambda t: (0, t, 0)),
                compiler_params=_compiler_params(("parallel",), vmem_limit),
            )(*[img.reshape(R, K) for img in image_list])
        else:
            def kernel(x_ref, o_ref):
                o_ref[...] = x_ref[...].astype(jnp.float32)

            x = jnp.stack([img.reshape(R, K) for img in image_list], axis=0)
            out = pl.pallas_call(
                kernel,
                out_shape=jax.ShapeDtypeStruct((N, R, K), jnp.float32),
                grid=(N, num_tiles),
                in_specs=[pl.BlockSpec((1, tm, K), lambda n, t: (n, t, 0))],
                out_specs=pl.BlockSpec((1, tm, K), lambda n, t: (n, t, 0)),
                compiler_params=_compiler_params(
                    ("parallel", "parallel"), vmem_limit),
            )(x)

        return out.reshape(N, C, H, W)

    # ------------------------------------------------------------------ #
    # General path: C*H*W not divisible by 128.  Tile the flat length with a
    # cdiv grid; Pallas masks the single partial edge block.  No jnp.pad
    # (extra u8 pass) and no post-kernel f32 slice (extra f32 pass).
    # ------------------------------------------------------------------ #
    # Per-step VMEM is dominated by sublane padding of the (1, tk) u8 blocks
    # (native u8 tile is (32, 128)); budget ~64*(N+1) bytes per lane.
    tk_fit = max(128, (fit_budget // (64 * (N + 1))) // 128 * 128)
    tk_par = max(128, _round_up(pl.cdiv(P, 8), 128))
    tk = min(tk_fit, tk_par)
    if tk >= P:
        tk = P                          # single full-extent block
    num_tiles = pl.cdiv(P, tk)

    blk_vmem = 32 * tk * (N + 1) + (8 << 10)
    vmem_limit = min(vmem_cap75, max(2 * blk_vmem + (8 << 20), 32 << 20))

    def kernel(*refs):
        in_refs, o_ref = refs[:-1], refs[-1]
        for n in range(N):
            o_ref[pl.ds(n, 1), :] = in_refs[n][...].astype(jnp.float32)

    out = pl.pallas_call(
        kernel,
        out_shape=jax.ShapeDtypeStruct((N, P), jnp.float32),
        grid=(num_tiles,),
        in_specs=[pl.BlockSpec((1, tk), lambda t: (0, t)) for _ in range(N)],
        out_specs=pl.BlockSpec((N, tk), lambda t: (0, t)),
        compiler_params=_compiler_params(("parallel",), vmem_limit),
    )(*[img.reshape(1, P) for img in image_list])

    return out.reshape(N, C, H, W)


if __name__ == "__main__":
    # Deterministic synthetic "decoded images" (stand-ins for read_image output).
    key = jax.random.PRNGKey(0)

    # Case 1: C*H*W divisible by 128 (lane-dense (R, K) path).
    N, C, H, W = 2, 3, 16, 16
    keys = jax.random.split(key, N)
    image_list = [
        jax.random.randint(k, (C, H, W), 0, 256, dtype=jnp.int32).astype(jnp.uint8)
        for k in keys
    ]
    out = jax.block_until_ready(load_images_pallas(image_list))
    ref = jnp.stack(image_list, axis=0).astype(jnp.float32)
    assert out.shape == (N, C, H, W)
    assert out.dtype == jnp.float32
    assert bool(jnp.all(out == ref))

    # Case 2: C*H*W NOT divisible by 128 (flat masked-edge path, no pad/slice).
    N2, C2, H2, W2 = 2, 3, 8, 10          # C*H*W = 240
    keys2 = jax.random.split(key, N + N2)[N:]
    image_list2 = [
        jax.random.randint(k, (C2, H2, W2), 0, 256, dtype=jnp.int32).astype(jnp.uint8)
        for k in keys2
    ]
    out2 = jax.block_until_ready(load_images_pallas(image_list2))
    ref2 = jnp.stack(image_list2, axis=0).astype(jnp.float32)
    assert out2.shape == (N2, C2, H2, W2)
    assert out2.dtype == jnp.float32
    assert bool(jnp.all(out2 == ref2))

    print("KERNEL_OK")
</pallas_src>

<mosaic_0001>
module attributes {stable_mosaic.version = 11 : i64} {
  func.func @kernel(%arg0: i32, %arg1: memref<3x256xi8, #tpu.memory_space<vmem>>, %arg2: memref<3x256xi8, #tpu.memory_space<vmem>>, %arg3: memref<2x3x256xf32, #tpu.memory_space<vmem>>) attributes {dimension_semantics = [#tpu.dimension_semantics<parallel>], iteration_bounds = array<i64: 1>, scalar_prefetch = 0 : i64, scratch_operands = 0 : i64, tpu.core_type = #tpu.core_type<tc>, window_params = [{transform_indices = @transform_0, window_bounds = array<i64: 3, 256>}, {transform_indices = @transform_1, window_bounds = array<i64: 3, 256>}, {transform_indices = @transform_2, window_bounds = array<i64: 2, 3, 256>}]} {
    %c0 = arith.constant 0 : index
    %c0_0 = arith.constant 0 : index
    %0 = vector.load %arg1[%c0, %c0_0] : memref<3x256xi8, #tpu.memory_space<vmem>>, vector<3x256xi8>
    %1 = arith.uitofp %0 : vector<3x256xi8> to vector<3x256xf32>
    %c0_1 = arith.constant 0 : index
    %c0_2 = arith.constant 0 : index
    %c0_3 = arith.constant 0 : index
    %2 = vector.load %arg3[%c0_1, %c0_2, %c0_3] : memref<2x3x256xf32, #tpu.memory_space<vmem>>, vector<1x3x256xf32>
    %3 = vector.shape_cast %2 : vector<1x3x256xf32> to vector<3x256xf32>
    %4 = vector.shape_cast %1 : vector<3x256xf32> to vector<1x3x256xf32>
    tpu.vector_store %arg3[%c0_1, %c0_2, %c0_3], %4 {strides = array<i32>} : memref<2x3x256xf32, #tpu.memory_space<vmem>>, vector<1x3x256xf32>,
    %c0_4 = arith.constant 0 : index
    %c0_5 = arith.constant 0 : index
    %5 = vector.load %arg2[%c0_4, %c0_5] : memref<3x256xi8, #tpu.memory_space<vmem>>, vector<3x256xi8>
    %6 = arith.uitofp %5 : vector<3x256xi8> to vector<3x256xf32>
    %c1 = arith.constant 1 : index
    %c0_6 = arith.constant 0 : index
    %c0_7 = arith.constant 0 : index
    %7 = vector.load %arg3[%c1, %c0_6, %c0_7] : memref<2x3x256xf32, #tpu.memory_space<vmem>>, vector<1x3x256xf32>
    %8 = vector.shape_cast %7 : vector<1x3x256xf32> to vector<3x256xf32>
    %9 = vector.shape_cast %6 : vector<3x256xf32> to vector<1x3x256xf32>
    tpu.vector_store %arg3[%c1, %c0_6, %c0_7], %9 {strides = array<i32>} : memref<2x3x256xf32, #tpu.memory_space<vmem>>, vector<1x3x256xf32>,
    return
  }
  func.func @transform_0(%arg0: i32) -> (i32, i32) {
    %c0_i32 = arith.constant 0 : i32
    %c0_i32_0 = arith.constant 0 : i32
    return %arg0, %c0_i32 : i32, i32
  }
  func.func @transform_1(%arg0: i32) -> (i32, i32) {
    %c0_i32 = arith.constant 0 : i32
    %c0_i32_0 = arith.constant 0 : i32
    return %arg0, %c0_i32 : i32, i32
  }
  func.func @transform_2(%arg0: i32) -> (i32, i32, i32) {
    %c0_i32 = arith.constant 0 : i32
    %c0_i32_0 = arith.constant 0 : i32
    %c0_i32_1 = arith.constant 0 : i32
    return %c0_i32, %arg0, %c0_i32_0 : i32, i32, i32
  }
}

</mosaic_0001>

<llo_original>
// kernel: tpu_custom_call.1
$region0: #{tpu_custom_call.1}
  #allocation0 [shape = 'u32[]', space=smem, size = 0x4, offset = 0x4, fixed_abs, tag = 'smem constant byte address 0x4 - core index']
  #allocation1 [shape = 'u32[144,128]{1,0:T(1,128)}', space=vmem, size = 0x12000, scoped, tag = 'internal scratch']
  %s0 = inlined_call_operand.hbm [shape: u8[3,256], index: 0, kind: input, shape index: {}]
  %s1 = inlined_call_operand.vmem [shape: u8[3,256], index: 1, kind: input, shape index: {}]
  %s2 = inlined_call_operand.vmem [shape: f32[2,3,256], index: 2, kind: output, shape index: {}]
  %s3 = sld [smem:[#allocation0]]
  $region22: #{tpu_custom_call.1} parent=0
    _
  %s5 = ssub.s32 1, %s3
  %s6 = scalar_select 0, %s5, %s3
  $region1: #{tpu_custom_call.1} parent=0
    #allocation2 [shape = 'u8[1024]{0}', space=vmem, size = 0x400, scoped, tag = 'input window, operand 0, single buffered']
    #allocation3 [shape = 's32[1]{0}', space=sflag, size = 0x4, scoped, tag = 'scoped memory for tpu_custom_call.1']
    %7 = vsyncpa [#allocation3], 0
    // Predicated region
    $region2: #{tpu_custom_call.1} parent=1 // pred_check
      _
    $region3: #{tpu_custom_call.1} parent=1 // pred_check_branch
      %9 = sbr.rel (0) target = $region5
    $region4: #{tpu_custom_call.1} parent=1 // pred_region
      %s11 = ssub.s32 32, 32
      %12 = vsyncadd [#allocation3], %s11
      %s14 = sshll.u32 [#allocation2], 4
      %s15 = int_to_ptr.vmem [resolvable:$true] %s14
      %17 = dma.hbm_to_vmem [thread:$0]  %s0, 32, %s15, [#allocation3]
    $region5: #{tpu_custom_call.1} parent=1 // pred_fallthru
      _
    // Predicated region
    $region6: #{tpu_custom_call.1} parent=1 // pred_check
      _
    $region7: #{tpu_custom_call.1} parent=1 // pred_check_branch
      %19 = sbr.rel (0) target = $region9
    $region8: #{tpu_custom_call.1} parent=1 // pred_region
      _
    $region9: #{tpu_custom_call.1} parent=1 // pred_fallthru
      _
    // Predicated region
    $region10: #{tpu_custom_call.1} parent=1 // pred_check
      _
    $region11: #{tpu_custom_call.1} parent=1 // pred_check_branch
      %21 = sbr.rel (0) target = $region13
    $region12: #{tpu_custom_call.1} parent=1 // pred_region
      %22 = dma.done [#allocation3], 32
    $region13: #{tpu_custom_call.1} parent=1 // pred_fallthru
      _
    %v23 = vld [vmem:[#allocation2] sm:$0x3]
    %v24 = vunpack.c.0.s8 %v23
    %v25 = vand.u32 %v24, 255
    %v26 = vcvt.s32.f32 %v25
    %27 = vst [vmem:[%s2] sm:$0x77] %v26
    %v28 = vld [vmem:[%s1] sm:$0x3]
    %v29 = vunpack.c.0.s8 %v28
    %v30 = vand.u32 %v29, 255
    %v31 = vcvt.s32.f32 %v30
    %s32 = scalar_lea.vmem %s2, 8
    %33 = vst [vmem:[%s32] sm:$0x77] %v31
    // Predicated region
    $region14: #{tpu_custom_call.1} parent=1 // pred_check
      _
    $region15: #{tpu_custom_call.1} parent=1 // pred_check_branch
      %35 = sbr.rel (0) target = $region17
    $region16: #{tpu_custom_call.1} parent=1 // pred_region
      _
    $region17: #{tpu_custom_call.1} parent=1 // pred_fallthru
      _
    // Predicated region
    $region18: #{tpu_custom_call.1} parent=1 // pred_check
      _
    $region19: #{tpu_custom_call.1} parent=1 // pred_check_branch
      %37 = sbr.rel (0) target = $region21
    $region20: #{tpu_custom_call.1} parent=1 // pred_region
      _
    $region21: #{tpu_custom_call.1} parent=1 // pred_fallthru
      _
    %38 = vsyncpa [#allocation3], 1

</llo_original>
